<compile_context>
chip_gen: v7x
topology: tpu7x:2x2x1
jax: 0.10.0
libtpu: 0.0.40
codegen_flags: <defaults>
</compile_context>

<pallas_src>
from collections import namedtuple

import jax
import jax.numpy as jnp
from jax.experimental import pallas as pl
from jax.experimental.pallas import tpu as pltpu

Outputs = namedtuple(
    "Outputs",
    ["action", "value", "dist", "state_out",
     "batch_sizes", "sorted_indices", "unsorted_indices"],
)
NormalDist = namedtuple("NormalDist", ["mean", "std"])


def _round_up(x, m):
    return ((x + m - 1) // m) * m


# ---------------------------------------------------------------------------
# Portable in-kernel RNG: counter hash -> uniform(0,1) -> inverse-normal CDF.
# ---------------------------------------------------------------------------

def _lsr(x, k):
    """Logical right shift for int32 (arithmetic shift + mask of sign bits)."""
    return jnp.bitwise_and(jnp.right_shift(x, k),
                           jnp.int32((1 << (32 - k)) - 1))


def _hash_uniform(idx, seed):
    """lowbias32-style avalanche hash of a per-element counter -> (0,1) f32."""
    gold = jnp.int32(-1640531527)   # 0x9E3779B9
    m1 = jnp.int32(2146121005)      # 0x7FEB352D
    m2 = jnp.int32(-2073254261)     # 0x846CA68B
    x = jnp.bitwise_xor(idx, seed * gold)
    x = jnp.bitwise_xor(x, _lsr(x, 16)) * m1
    x = jnp.bitwise_xor(x, _lsr(x, 15)) * m2
    x = jnp.bitwise_xor(x, _lsr(x, 16))
    mant = jnp.bitwise_and(x, jnp.int32(0x007FFFFF)).astype(jnp.float32)
    return (mant + 0.5) * (1.0 / float(1 << 23))        # strictly in (0, 1)


def _std_normal_from_uniform(u):
    """Acklam inverse-normal CDF, symmetric form: 1 log, 1 sqrt, 2 divides."""
    a1, a2, a3 = -3.969683028665376e+01, 2.209460984245205e+02, -2.759285104469687e+02
    a4, a5, a6 = 1.383577518672690e+02, -3.066479806614716e+01, 2.506628277459239e+00
    b1, b2, b3 = -5.447609879822406e+01, 1.615858368580409e+02, -1.556989798598866e+02
    b4, b5 = 6.680131188771972e+01, -1.328068155288572e+01
    c1, c2, c3 = -7.784894002430293e-03, -3.223964580411365e-01, -2.400758277161838e+00
    c4, c5, c6 = -2.549732539343734e+00, 4.374664141464968e+00, 2.938163982698783e+00
    d1, d2 = 7.784695709041462e-03, 3.224671290700398e-01
    d3, d4 = 2.445134137142996e+00, 3.754408661907416e+00
    p_low = 0.02425

    # Central region (odd rational in q; single divide).
    q = u - 0.5
    r = q * q
    num_c = (((((a1 * r + a2) * r + a3) * r + a4) * r + a5) * r + a6) * q
    den_c = ((((b1 * r + b2) * r + b3) * r + b4) * r + b5) * r + 1.0
    x_c = num_c / den_c

    # Single tail evaluation on min(u, 1-u); mirror for the upper tail.
    u_tail = jnp.minimum(u, 1.0 - u)                    # (0, 0.5]
    t = jnp.sqrt(-2.0 * jnp.log(u_tail))
    num_t = ((((c1 * t + c2) * t + c3) * t + c4) * t + c5) * t + c6
    den_t = (((d1 * t + d2) * t + d3) * t + d4) * t + 1.0
    x_t = num_t / den_t                                 # lower-tail value (< 0)
    x_t = jnp.where(q < 0.0, x_t, -x_t)

    return jnp.where(u_tail < p_low, x_t, x_c)


# ---------------------------------------------------------------------------
# Kernels
# ---------------------------------------------------------------------------

def _mlp_head(ob_ref, w1b_ref, whb_ref):
    """Shared fused MLP: returns mv = [mean | value]  (bm, A+1) in f32."""
    ob_dim = ob_ref.shape[1]
    hidden = w1b_ref.shape[1]
    obp = w1b_ref.shape[0] - 8     # W1 rows are zero-padded to obp (mult of 8)
    hp = whb_ref.shape[0] - 8      # W_head rows zero-padded to hp (mult of 8)

    ob = ob_ref[...].astype(jnp.float32)   # bf16 HBM obs OK; math stays f32
    h = jnp.tanh(
        jnp.dot(ob, w1b_ref[:ob_dim, :], preferred_element_type=jnp.float32)
        + w1b_ref[obp:obp + 1, :])                                  # (bm, H)
    mv = (jnp.dot(h, whb_ref[:hidden, :], preferred_element_type=jnp.float32)
          + whb_ref[hp:hp + 1, :])                                  # (bm, A+1)
    return mv


def _policy_det_kernel(ob_ref, w1b_ref, whb_ref, out_ref):
    """Deterministic path: action = mode = mean.  One full-width store."""
    out_ref[...] = _mlp_head(ob_ref, w1b_ref, whb_ref).astype(out_ref.dtype)


def _policy_sample_kernel(seed_ref, ob_ref, w1b_ref, whb_ref, out_ref):
    """Stochastic path: action = mean + std * eps.  One full-width store."""
    bm = ob_ref.shape[0]
    hp = whb_ref.shape[0] - 8
    act_dim = whb_ref.shape[1] - 1

    mv = _mlp_head(ob_ref, w1b_ref, whb_ref)            # (bm, A+1) = [mean|value]
    mean = mv[:, :act_dim]
    std = whb_ref[hp + 1:hp + 2, :act_dim]              # std row packed at pack time

    # Counter-based noise: global element index mixed with the user seed, so
    # every batch block draws from a distinct, decorrelated stream.
    row0 = pl.program_id(0) * bm                        # top level only (no pl.when)
    rows = row0 + jax.lax.broadcasted_iota(jnp.int32, (bm, act_dim), 0)
    cols = jax.lax.broadcasted_iota(jnp.int32, (bm, act_dim), 1)
    idx = rows * act_dim + cols
    eps = _std_normal_from_uniform(_hash_uniform(idx, seed_ref[0]))

    action = mean + std * eps
    # Single fused slab [action | mean | value], one unmasked-as-possible store.
    out_ref[...] = jnp.concatenate([action, mv], axis=1).astype(out_ref.dtype)


# ---------------------------------------------------------------------------
# Parameters
# ---------------------------------------------------------------------------

def init_params(ob_dim, hidden, act_dim):
    """Deterministic parameter init (no checkpoint load)."""
    k = jax.random.PRNGKey(42)
    k1, k2, k3 = jax.random.split(k, 3)
    w1 = jax.random.normal(k1, (ob_dim, hidden), jnp.float32) * 0.1
    b1 = jnp.zeros((1, hidden), jnp.float32)
    wa = jax.random.normal(k2, (hidden, act_dim), jnp.float32) * 0.1
    ba = jnp.zeros((1, act_dim), jnp.float32)
    wv = jax.random.normal(k3, (hidden, 1), jnp.float32) * 0.1
    bv = jnp.zeros((1, 1), jnp.float32)
    log_std = jnp.full((1, act_dim), -0.5, jnp.float32)
    return dict(w1=w1, b1=b1, wa=wa, ba=ba, wv=wv, bv=bv, log_std=log_std)


def pack_params(params):
    """One-time packing: fused heads, sublane-aligned sections, folded bias/std.

    w1b (obp+8, H):    rows [0:OB]=W1, zeros to obp, row obp = b1
    whb (hp+8, A+1):   rows [0:H]=[Wa|Wv], zeros to hp, row hp = [ba|bv],
                       row hp+1 = [exp(log_std) | 0]
    """
    ob_dim, hidden = params["w1"].shape
    act_dim = params["wa"].shape[1]
    obp = _round_up(ob_dim, 8)
    hp = _round_up(hidden, 8)

    w1b = jnp.zeros((obp + 8, hidden), jnp.float32)
    w1b = w1b.at[:ob_dim].set(params["w1"])
    w1b = w1b.at[obp].set(params["b1"][0])

    w_head = jnp.concatenate([params["wa"], params["wv"]], axis=1)   # (H, A+1)
    b_head = jnp.concatenate([params["ba"], params["bv"]], axis=1)   # (1, A+1)
    std_row = jnp.concatenate(
        [jnp.exp(params["log_std"]), jnp.zeros((1, 1), jnp.float32)], axis=1)
    whb = jnp.zeros((hp + 8, act_dim + 1), jnp.float32)
    whb = whb.at[:hidden].set(w_head)
    whb = whb.at[hp].set(b_head[0])
    whb = whb.at[hp + 1].set(std_row[0])

    return dict(w1b=w1b, whb=whb, log_std=params["log_std"],
                ob_dim=ob_dim, hidden=hidden, act_dim=act_dim)


# ---------------------------------------------------------------------------
# Wrapper (mirrors Policy.forward for a non-recurrent ActorCriticBase)
# ---------------------------------------------------------------------------

def _choose_bm(batch, block_rows):
    # Big blocks amortize the ~0.35us/grid-step overhead; for batches large
    # enough to split, keep >= 2 grid steps so ("parallel",) can use both of
    # v7x's TensorCores.  v5e/v6e (1 TC) simply get the largest block.
    if batch >= 1024:
        target = _round_up(pl.cdiv(batch, 2), 8)
    else:
        target = _round_up(batch, 8)
    return max(8, min(_round_up(block_rows, 8), target))


def policy_forward(ob, packed, *, seed=0, deterministic=False,
                   reparameterization_trick=False, block_rows=4096):
    """Mirror Policy.forward for an ActorCriticBase (non-recurrent)."""
    # sample() and rsample() are numerically identical here; the flag only
    # changes autodiff semantics in PyTorch.
    del reparameterization_trick

    B, ob_dim = ob.shape
    act_dim = packed["act_dim"]
    assert ob_dim == packed["ob_dim"]

    bm = _choose_bm(B, block_rows)
    grid_m = pl.cdiv(B, bm)          # ragged last block handled by Pallas: no pad copy
    w1b, whb = packed["w1b"], packed["whb"]
    cparams = pltpu.CompilerParams(dimension_semantics=("parallel",))

    if deterministic:
        out = pl.pallas_call(
            _policy_det_kernel,
            out_shape=jax.ShapeDtypeStruct((B, act_dim + 1), jnp.float32),
            grid=(grid_m,),
            in_specs=[
                pl.BlockSpec((bm, ob_dim), lambda i: (i, 0)),
                pl.BlockSpec(w1b.shape, lambda i: (0, 0)),   # constant-index: fetched once
                pl.BlockSpec(whb.shape, lambda i: (0, 0)),
            ],
            out_specs=pl.BlockSpec((bm, act_dim + 1), lambda i: (i, 0)),
            compiler_params=cparams,
        )(ob, w1b, whb)
        action = out[:, :act_dim]
        mean = action                                   # mode == mean
        value = out[:, act_dim]
    else:
        seed_arr = jnp.asarray([seed], dtype=jnp.int32)
        out = pl.pallas_call(
            _policy_sample_kernel,
            out_shape=jax.ShapeDtypeStruct((B, 2 * act_dim + 1), jnp.float32),
            grid_spec=pltpu.PrefetchScalarGridSpec(
                num_scalar_prefetch=1,
                grid=(grid_m,),
                in_specs=[
                    pl.BlockSpec((bm, ob_dim), lambda i, s: (i, 0)),
                    pl.BlockSpec(w1b.shape, lambda i, s: (0, 0)),
                    pl.BlockSpec(whb.shape, lambda i, s: (0, 0)),
                ],
                out_specs=pl.BlockSpec((bm, 2 * act_dim + 1), lambda i, s: (i, 0)),
            ),
            compiler_params=cparams,
        )(seed_arr, ob, w1b, whb)
        action = out[:, :act_dim]
        mean = out[:, act_dim:2 * act_dim]
        value = out[:, 2 * act_dim]

    std = jnp.broadcast_to(jnp.exp(packed["log_std"]), mean.shape)
    dist = NormalDist(mean=mean, std=std)

    # Non-PackedSequence branch of Policy.forward.
    # TODO(synk): PackedSequence observations / recurrent bases (state_in,
    # batch_sizes, sorted_indices) are not modeled.
    return Outputs(action=action, value=value, dist=dist, state_out=None,
                   batch_sizes=[0], sorted_indices=[0], unsorted_indices=[0])


if __name__ == "__main__":
    B, OB_DIM, HIDDEN, ACT_DIM = 8, 32, 32, 8

    key = jax.random.PRNGKey(0)
    ob = jax.random.normal(key, (B, OB_DIM), jnp.float32)

    params = init_params(OB_DIM, HIDDEN, ACT_DIM)
    packed = pack_params(params)

    # Pure-JAX reference for the deterministic pieces (mean / value).
    h_ref = jnp.tanh(ob @ params["w1"] + params["b1"])
    ref_mean = h_ref @ params["wa"] + params["ba"]
    ref_value = (h_ref @ params["wv"] + params["bv"])[:, 0]

    # Stochastic (dist.sample() / rsample()) path.
    out = policy_forward(ob, packed, seed=1234, deterministic=False)
    jax.block_until_ready(out.action)
    jax.block_until_ready(out.value)

    # Deterministic (dist.mode()) path.
    out_det = policy_forward(ob, packed, deterministic=True)
    jax.block_until_ready(out_det.action)

    assert out.action.shape == (B, ACT_DIM)
    assert out.value.shape == (B,)
    assert out.dist.mean.shape == (B, ACT_DIM)
    assert out.dist.std.shape == (B, ACT_DIM)

    # Deterministic action must equal the distribution mode (= mean).
    assert jnp.allclose(out_det.action, out_det.dist.mean)
    # Kernel mean / value must match the pure-JAX reference.
    assert jnp.allclose(out_det.action, ref_mean, atol=1e-5, rtol=1e-5)
    assert jnp.allclose(out.dist.mean, ref_mean, atol=1e-5, rtol=1e-5)
    assert jnp.allclose(out.value, ref_value, atol=1e-5, rtol=1e-5)
    assert jnp.allclose(out_det.value, ref_value, atol=1e-5, rtol=1e-5)
    # Stochastic action should be finite and actually perturbed off the mean.
    assert bool(jnp.all(jnp.isfinite(out.action)))
    assert not jnp.allclose(out.action, out.dist.mean)

    print("KERNEL_OK")
</pallas_src>

<mosaic_0001>
module attributes {stable_mosaic.version = 11 : i64} {
  func.func @_policy_sample_kernel(%arg0: i32, %arg1: memref<1xi32, #tpu.memory_space<smem>>, %arg2: memref<8x32xf32, #tpu.memory_space<vmem>>, %arg3: memref<40x32xf32, #tpu.memory_space<vmem>>, %arg4: memref<40x9xf32, #tpu.memory_space<vmem>>, %arg5: memref<8x17xf32, #tpu.memory_space<vmem>>) attributes {dimension_semantics = [#tpu.dimension_semantics<parallel>], iteration_bounds = array<i64: 1>, scalar_prefetch = 1 : i64, scratch_operands = 0 : i64, tpu.core_type = #tpu.core_type<tc>, window_params = [{transform_indices = @transform_0, window_bounds = array<i64: 8, 32>}, {pipeline_mode = #tpu.pipeline_mode<synchronous>, transform_indices = @transform_1, window_bounds = array<i64: 40, 32>}, {pipeline_mode = #tpu.pipeline_mode<synchronous>, transform_indices = @transform_2, window_bounds = array<i64: 40, 9>}, {transform_indices = @transform_3, window_bounds = array<i64: 8, 17>}]} {
    %c0 = arith.constant 0 : index
    %c0_0 = arith.constant 0 : index
    %0 = vector.load %arg2[%c0, %c0_0] : memref<8x32xf32, #tpu.memory_space<vmem>>, vector<8x32xf32>
    %c0_1 = arith.constant 0 : index
    %c0_2 = arith.constant 0 : index
    %1 = vector.load %arg3[%c0_1, %c0_2] : memref<40x32xf32, #tpu.memory_space<vmem>>, vector<32x32xf32>
    %cst = arith.constant dense<0.000000e+00> : vector<8x32xf32>
    %2 = tpu.matmul %0, %1, %cst {dimension_numbers = #tpu.dot_dimension_numbers<[1], [0], [0], [1], [0, 0, 1, 1], [], []>} : vector<8x32xf32>, vector<32x32xf32>, vector<8x32xf32> -> vector<8x32xf32>
    %c32 = arith.constant 32 : index
    %c0_3 = arith.constant 0 : index
    %3 = vector.load %arg3[%c32, %c0_3] : memref<40x32xf32, #tpu.memory_space<vmem>>, vector<1x32xf32>
    %4 = vector.broadcast %3 : vector<1x32xf32> to vector<8x32xf32>
    %5 = arith.addf %2, %4 : vector<8x32xf32>
    %6 = math.tanh %5 : vector<8x32xf32>
    %c0_4 = arith.constant 0 : index
    %c0_5 = arith.constant 0 : index
    %7 = vector.load %arg4[%c0_4, %c0_5] : memref<40x9xf32, #tpu.memory_space<vmem>>, vector<32x9xf32>
    %cst_6 = arith.constant dense<0.000000e+00> : vector<8x9xf32>
    %8 = tpu.matmul %6, %7, %cst_6 {dimension_numbers = #tpu.dot_dimension_numbers<[1], [0], [0], [1], [0, 0, 1, 1], [], []>} : vector<8x32xf32>, vector<32x9xf32>, vector<8x9xf32> -> vector<8x9xf32>
    %c32_7 = arith.constant 32 : index
    %c0_8 = arith.constant 0 : index
    %9 = vector.load %arg4[%c32_7, %c0_8] : memref<40x9xf32, #tpu.memory_space<vmem>>, vector<1x9xf32>
    %10 = vector.broadcast %9 : vector<1x9xf32> to vector<8x9xf32>
    %11 = arith.addf %8, %10 : vector<8x9xf32>
    %12 = vector.extract_strided_slice %11 {offsets = [0, 0], sizes = [8, 8], strides = [1, 1]} : vector<8x9xf32> to vector<8x8xf32>
    %c33 = arith.constant 33 : index
    %c0_9 = arith.constant 0 : index
    %13 = vector.load %arg4[%c33, %c0_9] : memref<40x9xf32, #tpu.memory_space<vmem>>, vector<1x8xf32>
    %c8_i32 = arith.constant 8 : i32
    %14 = arith.muli %arg0, %c8_i32 : i32
    %15 = tpu.iota {dimensions = array<i32: 0>} : vector<8x8xi32>
    %16 = vector.broadcast %14 : i32 to vector<8x8xi32>
    %17 = arith.addi %16, %15 : vector<8x8xi32>
    %18 = tpu.iota {dimensions = array<i32: 1>} : vector<8x8xi32>
    %c8_i32_10 = arith.constant 8 : i32
    %19 = vector.broadcast %c8_i32_10 : i32 to vector<8x8xi32>
    %20 = arith.muli %17, %19 : vector<8x8xi32>
    %21 = arith.addi %20, %18 : vector<8x8xi32>
    %c0_11 = arith.constant 0 : index
    %22 = memref.load %arg1[%c0_11] : memref<1xi32, #tpu.memory_space<smem>>
    %c-1640531527_i32 = arith.constant -1640531527 : i32
    %23 = arith.muli %22, %c-1640531527_i32 : i32
    %24 = vector.broadcast %23 : i32 to vector<8x8xi32>
    %25 = arith.xori %21, %24 : vector<8x8xi32>
    %c16_i32 = arith.constant 16 : i32
    %26 = vector.broadcast %c16_i32 : i32 to vector<8x8xi32>
    %27 = arith.shrsi %25, %26 : vector<8x8xi32>
    %c65535_i32 = arith.constant 65535 : i32
    %28 = vector.broadcast %c65535_i32 : i32 to vector<8x8xi32>
    %29 = arith.andi %27, %28 : vector<8x8xi32>
    %30 = arith.xori %25, %29 : vector<8x8xi32>
    %c2146121005_i32 = arith.constant 2146121005 : i32
    %31 = vector.broadcast %c2146121005_i32 : i32 to vector<8x8xi32>
    %32 = arith.muli %30, %31 : vector<8x8xi32>
    %c15_i32 = arith.constant 15 : i32
    %33 = vector.broadcast %c15_i32 : i32 to vector<8x8xi32>
    %34 = arith.shrsi %32, %33 : vector<8x8xi32>
    %c131071_i32 = arith.constant 131071 : i32
    %35 = vector.broadcast %c131071_i32 : i32 to vector<8x8xi32>
    %36 = arith.andi %34, %35 : vector<8x8xi32>
    %37 = arith.xori %32, %36 : vector<8x8xi32>
    %c-2073254261_i32 = arith.constant -2073254261 : i32
    %38 = vector.broadcast %c-2073254261_i32 : i32 to vector<8x8xi32>
    %39 = arith.muli %37, %38 : vector<8x8xi32>
    %c16_i32_12 = arith.constant 16 : i32
    %40 = vector.broadcast %c16_i32_12 : i32 to vector<8x8xi32>
    %41 = arith.shrsi %39, %40 : vector<8x8xi32>
    %c65535_i32_13 = arith.constant 65535 : i32
    %42 = vector.broadcast %c65535_i32_13 : i32 to vector<8x8xi32>
    %43 = arith.andi %41, %42 : vector<8x8xi32>
    %44 = arith.xori %39, %43 : vector<8x8xi32>
    %c8388607_i32 = arith.constant 8388607 : i32
    %45 = vector.broadcast %c8388607_i32 : i32 to vector<8x8xi32>
    %46 = arith.andi %44, %45 : vector<8x8xi32>
    %47 = arith.sitofp %46 : vector<8x8xi32> to vector<8x8xf32>
    %cst_14 = arith.constant 5.000000e-01 : f32
    %48 = vector.broadcast %cst_14 : f32 to vector<8x8xf32>
    %49 = arith.addf %47, %48 : vector<8x8xf32>
    %cst_15 = arith.constant 1.1920929E-7 : f32
    %50 = vector.broadcast %cst_15 : f32 to vector<8x8xf32>
    %51 = arith.mulf %49, %50 : vector<8x8xf32>
    %cst_16 = arith.constant 5.000000e-01 : f32
    %52 = vector.broadcast %cst_16 : f32 to vector<8x8xf32>
    %53 = arith.subf %51, %52 : vector<8x8xf32>
    %54 = arith.mulf %53, %53 : vector<8x8xf32>
    %cst_17 = arith.constant -39.6968307 : f32
    %55 = vector.broadcast %cst_17 : f32 to vector<8x8xf32>
    %56 = arith.mulf %55, %54 : vector<8x8xf32>
    %cst_18 = arith.constant 220.946106 : f32
    %57 = vector.broadcast %cst_18 : f32 to vector<8x8xf32>
    %58 = arith.addf %56, %57 : vector<8x8xf32>
    %59 = arith.mulf %58, %54 : vector<8x8xf32>
    %cst_19 = arith.constant -275.928497 : f32
    %60 = vector.broadcast %cst_19 : f32 to vector<8x8xf32>
    %61 = arith.addf %59, %60 : vector<8x8xf32>
    %62 = arith.mulf %61, %54 : vector<8x8xf32>
    %cst_20 = arith.constant 138.357758 : f32
    %63 = vector.broadcast %cst_20 : f32 to vector<8x8xf32>
    %64 = arith.addf %62, %63 : vector<8x8xf32>
    %65 = arith.mulf %64, %54 : vector<8x8xf32>
    %cst_21 = arith.constant -30.6647987 : f32
    %66 = vector.broadcast %cst_21 : f32 to vector<8x8xf32>
    %67 = arith.addf %65, %66 : vector<8x8xf32>
    %68 = arith.mulf %67, %54 : vector<8x8xf32>
    %cst_22 = arith.constant 2.50662827 : f32
    %69 = vector.broadcast %cst_22 : f32 to vector<8x8xf32>
    %70 = arith.addf %68, %69 : vector<8x8xf32>
    %71 = arith.mulf %70, %53 : vector<8x8xf32>
    %cst_23 = arith.constant -54.4760971 : f32
    %72 = vector.broadcast %cst_23 : f32 to vector<8x8xf32>
    %73 = arith.mulf %72, %54 : vector<8x8xf32>
    %cst_24 = arith.constant 161.585831 : f32
    %74 = vector.broadcast %cst_24 : f32 to vector<8x8xf32>
    %75 = arith.addf %73, %74 : vector<8x8xf32>
    %76 = arith.mulf %75, %54 : vector<8x8xf32>
    %cst_25 = arith.constant -155.698975 : f32
    %77 = vector.broadcast %cst_25 : f32 to vector<8x8xf32>
    %78 = arith.addf %76, %77 : vector<8x8xf32>
    %79 = arith.mulf %78, %54 : vector<8x8xf32>
    %cst_26 = arith.constant 66.8013153 : f32
    %80 = vector.broadcast %cst_26 : f32 to vector<8x8xf32>
    %81 = arith.addf %79, %80 : vector<8x8xf32>
    %82 = arith.mulf %81, %54 : vector<8x8xf32>
    %cst_27 = arith.constant -13.2806816 : f32
    %83 = vector.broadcast %cst_27 : f32 to vector<8x8xf32>
    %84 = arith.addf %82, %83 : vector<8x8xf32>
    %85 = arith.mulf %84, %54 : vector<8x8xf32>
    %cst_28 = arith.constant 1.000000e+00 : f32
    %86 = vector.broadcast %cst_28 : f32 to vector<8x8xf32>
    %87 = arith.addf %85, %86 : vector<8x8xf32>
    %88 = arith.divf %71, %87 : vector<8x8xf32>
    %cst_29 = arith.constant 1.000000e+00 : f32
    %89 = vector.broadcast %cst_29 : f32 to vector<8x8xf32>
    %90 = arith.subf %89, %51 : vector<8x8xf32>
    %91 = arith.minimumf %51, %90 : vector<8x8xf32>
    %92 = math.log %91 : vector<8x8xf32>
    %cst_30 = arith.constant -2.000000e+00 : f32
    %93 = vector.broadcast %cst_30 : f32 to vector<8x8xf32>
    %94 = arith.mulf %93, %92 : vector<8x8xf32>
    %95 = math.sqrt %94 : vector<8x8xf32>
    %cst_31 = arith.constant -0.0077848942 : f32
    %96 = vector.broadcast %cst_31 : f32 to vector<8x8xf32>
    %97 = arith.mulf %96, %95 : vector<8x8xf32>
    %cst_32 = arith.constant -0.322396457 : f32
    %98 = vector.broadcast %cst_32 : f32 to vector<8x8xf32>
    %99 = arith.addf %97, %98 : vector<8x8xf32>
    %100 = arith.mulf %99, %95 : vector<8x8xf32>
    %cst_33 = arith.constant -2.40075827 : f32
    %101 = vector.broadcast %cst_33 : f32 to vector<8x8xf32>
    %102 = arith.addf %100, %101 : vector<8x8xf32>
    %103 = arith.mulf %102, %95 : vector<8x8xf32>
    %cst_34 = arith.constant -2.54973245 : f32
    %104 = vector.broadcast %cst_34 : f32 to vector<8x8xf32>
    %105 = arith.addf %103, %104 : vector<8x8xf32>
    %106 = arith.mulf %105, %95 : vector<8x8xf32>
    %cst_35 = arith.constant 4.37466431 : f32
    %107 = vector.broadcast %cst_35 : f32 to vector<8x8xf32>
    %108 = arith.addf %106, %107 : vector<8x8xf32>
    %109 = arith.mulf %108, %95 : vector<8x8xf32>
    %cst_36 = arith.constant 2.938164 : f32
    %110 = vector.broadcast %cst_36 : f32 to vector<8x8xf32>
    %111 = arith.addf %109, %110 : vector<8x8xf32>
    %cst_37 = arith.constant 0.00778469583 : f32
    %112 = vector.broadcast %cst_37 : f32 to vector<8x8xf32>
    %113 = arith.mulf %112, %95 : vector<8x8xf32>
    %cst_38 = arith.constant 0.322467119 : f32
    %114 = vector.broadcast %cst_38 : f32 to vector<8x8xf32>
    %115 = arith.addf %113, %114 : vector<8x8xf32>
    %116 = arith.mulf %115, %95 : vector<8x8xf32>
    %cst_39 = arith.constant 2.44513416 : f32
    %117 = vector.broadcast %cst_39 : f32 to vector<8x8xf32>
    %118 = arith.addf %116, %117 : vector<8x8xf32>
    %119 = arith.mulf %118, %95 : vector<8x8xf32>
    %cst_40 = arith.constant 3.7544086 : f32
    %120 = vector.broadcast %cst_40 : f32 to vector<8x8xf32>
    %121 = arith.addf %119, %120 : vector<8x8xf32>
    %122 = arith.mulf %121, %95 : vector<8x8xf32>
    %cst_41 = arith.constant 1.000000e+00 : f32
    %123 = vector.broadcast %cst_41 : f32 to vector<8x8xf32>
    %124 = arith.addf %122, %123 : vector<8x8xf32>
    %125 = arith.divf %111, %124 : vector<8x8xf32>
    %cst_42 = arith.constant 0.000000e+00 : f32
    %126 = vector.broadcast %cst_42 : f32 to vector<8x8xf32>
    %127 = arith.cmpf olt, %53, %126 : vector<8x8xf32>
    %cst_43 = arith.constant 0.000000e+00 : f32
    %128 = vector.broadcast %cst_43 : f32 to vector<8x8xf32>
    %129 = arith.subf %128, %125 : vector<8x8xf32>
    %130 = arith.select %127, %125, %129 : vector<8x8xi1>, vector<8x8xf32>
    %cst_44 = arith.constant 2.425000e-02 : f32
    %131 = vector.broadcast %cst_44 : f32 to vector<8x8xf32>
    %132 = arith.cmpf olt, %91, %131 : vector<8x8xf32>
    %133 = arith.select %132, %130, %88 : vector<8x8xi1>, vector<8x8xf32>
    %134 = vector.broadcast %13 : vector<1x8xf32> to vector<8x8xf32>
    %135 = arith.mulf %134, %133 : vector<8x8xf32>
    %136 = arith.addf %12, %135 : vector<8x8xf32>
    %137 = tpu.concatenate %136, %11 in 1 : vector<8x8xf32>, vector<8x9xf32> -> vector<8x17xf32>
    %c0_45 = arith.constant 0 : index
    %c0_46 = arith.constant 0 : index
    %138 = vector.load %arg5[%c0_45, %c0_46] : memref<8x17xf32, #tpu.memory_space<vmem>>, vector<8x17xf32>
    tpu.vector_store %arg5[%c0_45, %c0_46], %137 {strides = array<i32>} : memref<8x17xf32, #tpu.memory_space<vmem>>, vector<8x17xf32>,
    return
  }
  func.func @transform_0(%arg0: i32, %arg1: memref<1xi32, #tpu.memory_space<smem>>) -> (i32, i32) {
    %c0_i32 = arith.constant 0 : i32
    %c0_i32_0 = arith.constant 0 : i32
    return %arg0, %c0_i32 : i32, i32
  }
  func.func @transform_1(%arg0: i32, %arg1: memref<1xi32, #tpu.memory_space<smem>>) -> (i32, i32) {
    %c0_i32 = arith.constant 0 : i32
    %c0_i32_0 = arith.constant 0 : i32
    %c0_i32_1 = arith.constant 0 : i32
    return %c0_i32, %c0_i32_0 : i32, i32
  }
  func.func @transform_2(%arg0: i32, %arg1: memref<1xi32, #tpu.memory_space<smem>>) -> (i32, i32) {
    %c0_i32 = arith.constant 0 : i32
    %c0_i32_0 = arith.constant 0 : i32
    %c0_i32_1 = arith.constant 0 : i32
    return %c0_i32, %c0_i32_0 : i32, i32
  }
  func.func @transform_3(%arg0: i32, %arg1: memref<1xi32, #tpu.memory_space<smem>>) -> (i32, i32) {
    %c0_i32 = arith.constant 0 : i32
    %c0_i32_0 = arith.constant 0 : i32
    return %arg0, %c0_i32 : i32, i32
  }
}

</mosaic_0001>

<llo_original>
// kernel: tpu_custom_call.1
$region0: #{tpu_custom_call.1}
  #allocation0 [shape = 'u32[]', space=smem, size = 0x4, offset = 0x4, fixed_abs, tag = 'smem constant byte address 0x4 - core index']
  #allocation1 [shape = 'u32[144,128]{1,0:T(1,128)}', space=vmem, size = 0x12000, scoped, tag = 'internal scratch']
  #allocation2 [shape = 's32[1]{0}', space=sflag, size = 0x4, scoped, tag = 'scoped memory for tpu_custom_call.1']
  #allocation3 [shape = 's32[1]{0:T(128)S(6)}', space=smem, size = 0x200, scoped, tag = 'prefetched SMEM operand 0']
  %s0 = inlined_call_operand.<no memory space> [shape: s32[1], index: 0, kind: input, shape index: {}]
  %s1 = inlined_call_operand.vmem [shape: f32[8,32], index: 1, kind: input, shape index: {}]
  %s2 = inlined_call_operand.vmem [shape: f32[40,32], index: 2, kind: input, shape index: {}]
  %s3 = inlined_call_operand.vmem [shape: f32[40,9], index: 3, kind: input, shape index: {}]
  %s4 = inlined_call_operand.hbm [shape: f32[8,17], index: 4, kind: output, shape index: {}]
  %s5 = sld [smem:[#allocation0]]
  $region22: #{tpu_custom_call.1} parent=0
    _
  %s7 = ssub.s32 1, %s5
  %s8 = scalar_select 0, %s7, %s5
  %9 = sst [smem:[#allocation3]] %s0
  $region1: #{tpu_custom_call.1} parent=0
    #allocation4 [shape = 'u8[4096]{0}', space=vmem, size = 0x1000, scoped, tag = 'output window, operand 0, single buffered']
    #allocation5 [shape = 's32[1]{0}', space=sflag, size = 0x4, scoped, tag = 'scoped memory for tpu_custom_call.1']
    %10 = vsyncpa [#allocation5], 0
    // Predicated region
    $region2: #{tpu_custom_call.1} parent=1 // pred_check
      _
    $region3: #{tpu_custom_call.1} parent=1 // pred_check_branch
      %12 = sbr.rel (0) target = $region5
    $region4: #{tpu_custom_call.1} parent=1 // pred_region
      _
    $region5: #{tpu_custom_call.1} parent=1 // pred_fallthru
      _
    // Predicated region
    $region6: #{tpu_custom_call.1} parent=1 // pred_check
      _
    $region7: #{tpu_custom_call.1} parent=1 // pred_check_branch
      %14 = sbr.rel (0) target = $region9
    $region8: #{tpu_custom_call.1} parent=1 // pred_region
      _
    $region9: #{tpu_custom_call.1} parent=1 // pred_fallthru
      _
    // Predicated region
    $region10: #{tpu_custom_call.1} parent=1 // pred_check
      _
    $region11: #{tpu_custom_call.1} parent=1 // pred_check_branch
      %16 = sbr.rel (0) target = $region13
    $region12: #{tpu_custom_call.1} parent=1 // pred_region
      _
    $region13: #{tpu_custom_call.1} parent=1 // pred_fallthru
      _
    %v17 = vld [vmem:[%s1] sm:$0xff]
    %v18 = vld [vmem:[%s2] sm:$0xff]
    %v19 = vld [vmem:[%s2 + $0x8] sm:$0xff]
    %v20 = vld [vmem:[%s2 + $0x10] sm:$0xff]
    %v21 = vld [vmem:[%s2 + $0x18] sm:$0xff]
    %v22 = vld [vmem:[%s2 + $0x20] sm:$0x1]
    %v23 = vlaneseq
    %v24 = vshrl.u32 %v23, 7
    %v25 = vsub.s32 0, %v24
    %v26 = vrot.slane %v22, %v25
    %vm27 = vcmask 261120
    %v29 = vsel %vm27, %v17, 0
    %31 = vmatprep.subr.mxu0 0.0
    %32 = vmatpush1.msra.mxu0 %v18
    %33 = vmatprep.subr.mxu0 0.0
    %34 = vmatpush1.msra.mxu0 %v19
    %35 = vmatprep.subr.mxu0 0.0
    %36 = vmatpush1.msra.mxu0 %v20
    %37 = vmatprep.subr.mxu0 0.0
    %38 = vmatpush1.msra.mxu0 %v21
    %39 = vmatprep.subr.mxu0 0.0
    %40 = vmatpush1.msra.mxu0 0.0
    %41 = vmatprep.subr.mxu0 0.0
    %42 = vmatpush1.msra.mxu0 0.0
    %43 = vmatprep.subr.mxu0 0.0
    %44 = vmatpush1.msra.mxu0 0.0
    %45 = vmatprep.subr.mxu0 0.0
    %46 = vmatpush1.msra.mxu0 0.0
    %47 = vmatprep.subr.mxu0 0.0
    %48 = vmatpush1.msra.mxu0 0.0
    %49 = vmatprep.subr.mxu0 0.0
    %50 = vmatpush1.msra.mxu0 0.0
    %51 = vmatprep.subr.mxu0 0.0
    %52 = vmatpush1.msra.mxu0 0.0
    %53 = vmatprep.subr.mxu0 0.0
    %54 = vmatpush1.msra.mxu0 0.0
    %55 = vmatprep.subr.mxu0 0.0
    %56 = vmatpush1.msra.mxu0 0.0
    %57 = vmatprep.subr.mxu0 0.0
    %58 = vmatpush1.msra.mxu0 0.0
    %59 = vmatprep.subr.mxu0 0.0
    %60 = vmatpush1.msra.mxu0 0.0
    %61 = vmatprep.subr.mxu0 0.0
    %62 = vmatpush1.msra.mxu0 0.0
    %63 = vmatprep.subr.mxu0 0.0
    %64 = vmatpush1.msra.mxu0 0.0
    %65 = vmatprep.subr.mxu0 0.0
    %66 = vmatpush1.msra.mxu0 0.0
    %67 = vmatprep.subr.mxu0 0.0
    %68 = vmatpush1.msra.mxu0 0.0
    %69 = vmatprep.subr.mxu0 0.0
    %70 = vmatpush1.msra.mxu0 0.0
    %71 = vmatprep.subr.mxu0 0.0
    %72 = vmatpush1.msra.mxu0 0.0
    %73 = vmatprep.subr.mxu0 0.0
    %74 = vmatpush1.msra.mxu0 0.0
    %75 = vmatprep.subr.mxu0 0.0
    %76 = vmatpush1.msra.mxu0 0.0
    %77 = vmatprep.subr.mxu0 0.0
    %78 = vmatpush1.msra.mxu0 0.0
    %79 = vmatprep.subr.mxu0 0.0
    %80 = vmatpush1.msra.mxu0 0.0
    %81 = vmatprep.subr.mxu0 0.0
    %82 = vmatpush1.msra.mxu0 0.0
    %83 = vmatprep.subr.mxu0 0.0
    %84 = vmatpush1.msra.mxu0 0.0
    %85 = vmatprep.subr.mxu0 0.0
    %86 = vmatpush1.msra.mxu0 0.0
    %87 = vmatprep.subr.mxu0 0.0
    %88 = vmatpush1.msra.mxu0 0.0
    %89 = vmatprep.subr.mxu0 0.0
    %90 = vmatpush1.msra.mxu0 0.0
    %91 = vmatprep.subr.mxu0 0.0
    %92 = vmatpush1.msra.mxu0 0.0
    %93 = vmatprep.subr.mxu0 0.0
    %94 = vmatpush1.msra.mxu0 0.0
    %95 = vmatprep.mubr.f32.mxu0 0.0
    %96 = vmatmul.mubr.f32.gmra.mrb[0].mxu0 %v29
    %v97 = vpop.f32.mrb[0].mxu0
    %v98 = vadd.f32 %v26, %v97
    %v99 = vpop.f32.mrb[0].mxu0
    %100 = vdwg.mxu0
    %v101 = vtanh.pop %v98
    %v102 = vld [vmem:[%s3] sm:$0xff]
    %v103 = vld [vmem:[%s3 + $0x8] sm:$0xff]
    %v104 = vld [vmem:[%s3 + $0x10] sm:$0xff]
    %v105 = vld [vmem:[%s3 + $0x18] sm:$0xff]
    %v106 = vld [vmem:[%s3 + $0x20] sm:$0x1]
    %v107 = vlaneseq
    %v108 = vshrl.u32 %v107, 7
    %v109 = vsub.s32 0, %v108
    %v110 = vrot.slane %v106, %v109
    %v112 = vsel %vm27, %v101, 0
    %114 = vmatprep.subr.mxu0 0.0
    %115 = vmatpush1.msra.mxu0 %v102
    %116 = vmatprep.subr.mxu0 0.0
    %117 = vmatpush1.msra.mxu0 %v103
    %118 = vmatprep.subr.mxu0 0.0
    %119 = vmatpush1.msra.mxu0 %v104
    %120 = vmatprep.subr.mxu0 0.0
    %121 = vmatpush1.msra.mxu0 %v105
    %122 = vmatprep.subr.mxu0 0.0
    %123 = vmatpush1.msra.mxu0 0.0
    %124 = vmatprep.subr.mxu0 0.0
    %125 = vmatpush1.msra.mxu0 0.0
    %126 = vmatprep.subr.mxu0 0.0
    %127 = vmatpush1.msra.mxu0 0.0
    %128 = vmatprep.subr.mxu0 0.0
    %129 = vmatpush1.msra.mxu0 0.0
    %130 = vmatprep.subr.mxu0 0.0
    %131 = vmatpush1.msra.mxu0 0.0
    %132 = vmatprep.subr.mxu0 0.0
    %133 = vmatpush1.msra.mxu0 0.0
    %134 = vmatprep.subr.mxu0 0.0
    %135 = vmatpush1.msra.mxu0 0.0
    %136 = vmatprep.subr.mxu0 0.0
    %137 = vmatpush1.msra.mxu0 0.0
    %138 = vmatprep.subr.mxu0 0.0
    %139 = vmatpush1.msra.mxu0 0.0
    %140 = vmatprep.subr.mxu0 0.0
    %141 = vmatpush1.msra.mxu0 0.0
    %142 = vmatprep.subr.mxu0 0.0
    %143 = vmatpush1.msra.mxu0 0.0
    %144 = vmatprep.subr.mxu0 0.0
    %145 = vmatpush1.msra.mxu0 0.0
    %146 = vmatprep.subr.mxu0 0.0
    %147 = vmatpush1.msra.mxu0 0.0
    %148 = vmatprep.subr.mxu0 0.0
    %149 = vmatpush1.msra.mxu0 0.0
    %150 = vmatprep.subr.mxu0 0.0
    %151 = vmatpush1.msra.mxu0 0.0
    %152 = vmatprep.subr.mxu0 0.0
    %153 = vmatpush1.msra.mxu0 0.0
    %154 = vmatprep.subr.mxu0 0.0
    %155 = vmatpush1.msra.mxu0 0.0
    %156 = vmatprep.subr.mxu0 0.0
    %157 = vmatpush1.msra.mxu0 0.0
    %158 = vmatprep.subr.mxu0 0.0
    %159 = vmatpush1.msra.mxu0 0.0
    %160 = vmatprep.subr.mxu0 0.0
    %161 = vmatpush1.msra.mxu0 0.0
    %162 = vmatprep.subr.mxu0 0.0
    %163 = vmatpush1.msra.mxu0 0.0
    %164 = vmatprep.subr.mxu0 0.0
    %165 = vmatpush1.msra.mxu0 0.0
    %166 = vmatprep.subr.mxu0 0.0
    %167 = vmatpush1.msra.mxu0 0.0
    %168 = vmatprep.subr.mxu0 0.0
    %169 = vmatpush1.msra.mxu0 0.0
    %170 = vmatprep.subr.mxu0 0.0
    %171 = vmatpush1.msra.mxu0 0.0
    %172 = vmatprep.subr.mxu0 0.0
    %173 = vmatpush1.msra.mxu0 0.0
    %174 = vmatprep.subr.mxu0 0.0
    %175 = vmatpush1.msra.mxu0 0.0
    %176 = vmatprep.subr.mxu0 0.0
    %177 = vmatpush1.msra.mxu0 0.0
    %178 = vmatprep.mubr.f32.mxu0 0.0
    %179 = vmatmul.mubr.f32.gmra.mrb[0].mxu0 %v112
    %v180 = vpop.f32.mrb[0].mxu0
    %v181 = vadd.f32 %v110, %v180
    %v182 = vpop.f32.mrb[0].mxu0
    %183 = vdwg.mxu0
    %v184 = vld [vmem:[%s3 + $0x21] sm:$0x1]
    %s185 = smul.u32 0, 8
    %v186 = vlaneseq
    %v187 = vshrl.u32 %v186, 7
    %v188 = vstv %s185
    %v189 = vadd.s32 %v188, %v187
    %v190 = vlaneseq
    %v191 = vand.u32 %v190, 127
    %v192 = vmul.u32 %v189, 8
    %v193 = vadd.s32 %v192, %v191
    %s194 = sld [smem:[#allocation3]]
    %s195 = smul.u32 %s194, 2654435769
    %v196 = vstv %s195
    %v197 = vxor.u32 %v193, %v196
    %v198 = vshra.s32 %v197, 16
    %v199 = vand.u32 %v198, 65535
    %v200 = vxor.u32 %v197, %v199
    %v201 = vmul.u32 %v200, 2146121005
    %v202 = vshra.s32 %v201, 15
    %v203 = vand.u32 %v202, 131071
    %v204 = vxor.u32 %v201, %v203
    %v205 = vmul.u32 %v204, 2221713035
    %v206 = vshra.s32 %v205, 16
    %v207 = vand.u32 %v206, 65535
    %v208 = vxor.u32 %v205, %v207
    %v209 = vand.u32 %v208, 8388607
    %v210 = vcvt.s32.f32 %v209
    %v211 = vadd.f32 %v210, 0.5
    %v212 = vmul.f32 %v211, 1.1920929e-07
    %v213 = vsub.f32 %v212, 0.5
    %v214 = vmul.f32 %v213, %v213
    %v215 = vmul.f32 %v214, -39.69683
    %v216 = vadd.f32 %v215, 220.9461
    %v217 = vmul.f32 %v216, %v214
    %v218 = vadd.f32 %v217, -275.9285
    %v219 = vmul.f32 %v218, %v214
    %v220 = vadd.f32 %v219, 138.35776
    %v221 = vmul.f32 %v220, %v214
    %v222 = vadd.f32 %v221, -30.664799
    %v223 = vmul.f32 %v222, %v214
    %v224 = vadd.f32 %v223, 2.5066283
    %v225 = vmul.f32 %v224, %v213
    %v226 = vmul.f32 %v214, -54.476097
    %v227 = vadd.f32 %v226, 161.58583
    %v228 = vmul.f32 %v227, %v214
    %v229 = vadd.f32 %v228, -155.69897
    %v230 = vmul.f32 %v229, %v214
    %v231 = vadd.f32 %v230, 66.801315
    %v232 = vmul.f32 %v231, %v214
    %v233 = vadd.f32 %v232, -13.280682
    %v234 = vmul.f32 %v233, %v214
    %v235 = vadd.f32 %v234, 1.0
    %v236 = vrcp.pop %v235
    %v237 = vmul.f32 %v225, %v236
    %v238 = vsub.f32 1.0, %v212
    %v239 = vmin.f32 %v212, %v238
    %v240 = vlog2.pop %v239
    %v241 = vmul.f32 %v240, 0.6931472
    %v242 = vmul.f32 %v241, -2.0
    %v243 = vrsqrt.pop %v242
    %v244 = vmul.f32 %v242, %v243
    %vm245 = vcmp.eq.f32.partialorder %v242, inf
    %v246 = vsel %vm245, %v242, %v244
    %vm247 = vcmp.eq.f32.partialorder %v242, 0.0
    %v248 = vand.u32 %v242, 2147483648
    %v249 = vsel %vm247, %v248, %v246
    %v250 = vmul.f32 %v249, -0.007784894
    %v251 = vadd.f32 %v250, -0.32239646
    %v252 = vmul.f32 %v251, %v249
    %v253 = vadd.f32 %v252, -2.4007583
    %v254 = vmul.f32 %v253, %v249
    %v255 = vadd.f32 %v254, -2.5497324
    %v256 = vmul.f32 %v255, %v249
    %v257 = vadd.f32 %v256, 4.3746643
    %v258 = vmul.f32 %v257, %v249
    %v259 = vadd.f32 %v258, 2.938164
    %v260 = vmul.f32 %v249, 0.007784696
    %v261 = vadd.f32 %v260, 0.32246712
    %v262 = vmul.f32 %v261, %v249
    %v263 = vadd.f32 %v262, 2.4451342
    %v264 = vmul.f32 %v263, %v249
    %v265 = vadd.f32 %v264, 3.7544086
    %v266 = vmul.f32 %v265, %v249
    %v267 = vadd.f32 %v266, 1.0
    %v268 = vrcp.pop %v267
    %v269 = vmul.f32 %v259, %v268
    %vm270 = vcmp.lt.f32.partialorder %v213, 0.0
    %v271 = vsub.f32 0.0, %v269
    %v272 = vsel %vm270, %v269, %v271
    %vm273 = vcmp.lt.f32.partialorder %v239, 0.02425
    %v274 = vsel %vm273, %v272, %v237
    %v275 = vlaneseq
    %v276 = vshrl.u32 %v275, 7
    %v277 = vsub.s32 0, %v276
    %v278 = vrot.slane %v184, %v277
    %v279 = vmul.f32 %v278, %v274
    %v280 = vadd.f32 %v181, %v279
    %282 = vrot.lane.b32.xlu0 %v181, 8
    %v283 = vpop.permute.xlu0 %282
    %vm285 = vcmask 64512
    %v286 = vsel %vm285, %v280, %v283
    %vm287 = vcmask 138240
    %288 = vst.msk [vmem:[#allocation4] sm:$0xff] %vm287, %v286
    // Predicated region
    $region14: #{tpu_custom_call.1} parent=1 // pred_check
      _
    $region15: #{tpu_custom_call.1} parent=1 // pred_check_branch
      %290 = sbr.rel (0) target = $region17
    $region16: #{tpu_custom_call.1} parent=1 // pred_region
      %s292 = ssub.s32 128, 128
      %293 = vsyncadd [#allocation5], %s292
      %s295 = sshll.u32 [#allocation4], 4
      %s296 = int_to_ptr.vmem [resolvable:$true] %s295
      %298 = dma.vmem_to_hbm [thread:$0]  %s296, 128, %s4, [#allocation5]
    $region17: #{tpu_custom_call.1} parent=1 // pred_fallthru
      _
    // Predicated region
    $region18: #{tpu_custom_call.1} parent=1 // pred_check
      _
    $region19: #{tpu_custom_call.1} parent=1 // pred_check_branch
      %300 = sbr.rel (0) target = $region21
    $region20: #{tpu_custom_call.1} parent=1 // pred_region
      %301 = dma.done [#allocation5], 128
    $region21: #{tpu_custom_call.1} parent=1 // pred_fallthru
      _
    %302 = vsyncpa [#allocation5], 1

</llo_original>
